<compile_context>
chip_gen: v7x
topology: tpu7x:2x2x1
jax: 0.10.0
libtpu: 0.0.40
codegen_flags: <defaults>
</compile_context>

<pallas_src>
import math

import jax
import jax.numpy as jnp
from jax.experimental import pallas as pl
from jax.experimental.pallas import tpu as pltpu


_LANES = 128


def _round_up(a, m):
    return -(-a // m) * m


def _chip_config():
    """Returns (vmem_cap_bytes, target_block_bytes, num_tensorcores)."""
    kind = ""
    try:
        kind = jax.devices()[0].device_kind.lower()
    except Exception:
        pass
    if "v7" in kind or "tpu7" in kind:
        # v7x: 64 MiB physical VMEM, 2 TensorCores per chip.
        return 40 << 20, 3 << 20, 2
    if "v5" in kind or "v6" in kind:
        # v5e / v6e: 128 MiB physical VMEM, 1 TensorCore.
        return 96 << 20, 12 << 20, 1
    # Unknown generation: conservative (v7x-like) budget, single core.
    return 40 << 20, 3 << 20, 1


# ---------------------------------------------------------------------------
# Kernel 1: softmax over dim 0 (the `Discrete` sub-module)
# ---------------------------------------------------------------------------
def _softmax_dim0_kernel(x_ref, o_ref):
    # x_ref / o_ref: (B, tile_n). Full batch resident in the block; columns
    # are independent, so garbage lanes in a partial edge block are harmless
    # (they are never written back).
    x = x_ref[...].astype(jnp.float32)
    m = jnp.max(x, axis=0, keepdims=True)
    e = jnp.exp(x - m)
    s = jnp.sum(e, axis=0, keepdims=True)
    o_ref[...] = (e * pl.reciprocal(s, approx=False)).astype(o_ref.dtype)


def _make_softmax_dim0_two_pass_kernel(b_total, tile_b):
    """Large-B fallback: pass 0 accumulates per-column running max/sum in VMEM
    scratch across B tiles; pass 1 re-reads the input and normalizes."""

    def kernel(x_ref, o_ref, m_sc, s_sc):
        p = pl.program_id(1)    # 0 = accumulate stats, 1 = normalize & store
        bi = pl.program_id(2)   # batch-tile index (reduction axis)

        @pl.when(jnp.logical_and(p == 0, bi == 0))
        def _():
            m_sc[...] = jnp.full_like(m_sc, -jnp.inf)
            s_sc[...] = jnp.zeros_like(s_sc)

        x = x_ref[...].astype(jnp.float32)
        rows = jax.lax.broadcasted_iota(jnp.int32, x.shape, 0) + bi * tile_b
        valid = rows < b_total

        @pl.when(p == 0)
        def _():
            m_prev = m_sc[...]
            m_new = jnp.maximum(
                m_prev,
                jnp.max(jnp.where(valid, x, -jnp.inf), axis=0, keepdims=True))
            contrib = jnp.sum(jnp.where(valid, jnp.exp(x - m_new), 0.0),
                              axis=0, keepdims=True)
            s_sc[...] = s_sc[...] * jnp.exp(m_prev - m_new) + contrib
            m_sc[...] = m_new

        @pl.when(p == 1)
        def _():
            inv = pl.reciprocal(s_sc[...], approx=False)
            o_ref[...] = (jnp.exp(x - m_sc[...]) * inv).astype(o_ref.dtype)

    return kernel


def softmax_dim0(x, *, tile_n=None, force_two_pass=False,
                 two_pass_tile_b=None, two_pass_tile_n=None):
    """softmax(x, dim=0), matching torch.nn.functional.softmax(x, dim=0)."""
    orig_shape = x.shape
    b = int(orig_shape[0])
    n = 1
    for d in orig_shape[1:]:
        n *= int(d)
    x2 = x.reshape(b, n)
    itemsize = jnp.dtype(x.dtype).itemsize
    vmem_cap, target_block_bytes, num_tc = _chip_config()

    def live_bytes(cols, rows=b):
        blk_native = rows * cols * itemsize
        blk_f32 = rows * cols * 4
        # double-buffered input + double-buffered output + ~3 f32 temporaries
        return 4 * blk_native + 3 * blk_f32

    use_two_pass = force_two_pass or live_bytes(min(n, _LANES)) > vmem_cap

    if not use_two_pass:
        # ---- single pass: full batch resident, grid over the flattened N ----
        if tile_n is None:
            budget_cols = max(1, target_block_bytes // (b * 4))
            tile_n = max(_LANES, (budget_cols // _LANES) * _LANES)
            while tile_n > _LANES and live_bytes(tile_n) > vmem_cap:
                tile_n -= _LANES
            if tile_n >= n:
                tile_n = n
            if num_tc > 1 and n > _LANES:
                # v7x: shard the parallel axis evenly across both TensorCores.
                grid_now = pl.cdiv(n, tile_n)
                if grid_now == 1:
                    want = num_tc if b * n * 4 >= (256 << 10) else 1
                else:
                    want = _round_up(grid_now, num_tc)
                if want > 1:
                    tile_n = max(_LANES, _round_up(pl.cdiv(n, want), _LANES))
        tile_n = min(tile_n, n)
        grid_n = pl.cdiv(n, tile_n)
        vmem_limit = int(min(max(live_bytes(tile_n) + (4 << 20), 16 << 20),
                             vmem_cap))

        out2 = pl.pallas_call(
            _softmax_dim0_kernel,
            out_shape=jax.ShapeDtypeStruct((b, n), x.dtype),
            grid_spec=pltpu.PrefetchScalarGridSpec(
                num_scalar_prefetch=0,
                grid=(grid_n,),
                in_specs=[pl.BlockSpec((b, tile_n), lambda j: (0, j))],
                out_specs=pl.BlockSpec((b, tile_n), lambda j: (0, j)),
            ),
            compiler_params=pltpu.CompilerParams(
                dimension_semantics=("parallel",),
                vmem_limit_bytes=vmem_limit,
            ),
        )(x2)
        return out2.reshape(orig_shape)

    # ---- large-B fallback: two-pass online softmax over a grid on B ----
    t_n = two_pass_tile_n
    if t_n is None:
        t_n = n if n <= 1024 else 1024
    t_n = min(t_n, n)
    t_b = two_pass_tile_b
    if t_b is None:
        t_b = max(8, (target_block_bytes // (t_n * 4)) // 8 * 8)
    if t_b >= b:
        t_b = b
    grid_n = pl.cdiv(n, t_n)
    grid_b = pl.cdiv(b, t_b)
    blk = t_b * t_n
    vmem_limit = int(min(max(4 * blk * itemsize + 4 * blk * 4 + (4 << 20),
                             16 << 20), vmem_cap))

    kernel = _make_softmax_dim0_two_pass_kernel(b, t_b)
    out2 = pl.pallas_call(
        kernel,
        out_shape=jax.ShapeDtypeStruct((b, n), x.dtype),
        grid_spec=pltpu.PrefetchScalarGridSpec(
            num_scalar_prefetch=0,
            grid=(grid_n, 2, grid_b),
            in_specs=[pl.BlockSpec((t_b, t_n), lambda ni, p, bi: (bi, ni))],
            # During the stats pass (p == 0) the output block index is pinned
            # to (0, ni), so no un-written buffer is ever flushed to HBM; the
            # normalize pass (p == 1) sweeps and stores every (bi, ni) block.
            out_specs=pl.BlockSpec((t_b, t_n), lambda ni, p, bi: (bi * p, ni)),
            scratch_shapes=[pltpu.VMEM((1, t_n), jnp.float32),
                            pltpu.VMEM((1, t_n), jnp.float32)],
        ),
        compiler_params=pltpu.CompilerParams(
            dimension_semantics=("parallel", "arbitrary", "arbitrary"),
            vmem_limit_bytes=vmem_limit,
        ),
    )(x2)
    return out2.reshape(orig_shape)


# ---------------------------------------------------------------------------
# Kernel 2: full DiscreteModel forward (Linear(1,10) -> Linear(10,2) ->
#           softmax over dim 0), fused into one VMEM-resident kernel.
# ---------------------------------------------------------------------------
def _discrete_model_kernel(x_ref, w1_ref, b1_ref, w2_ref, b2_ref, o_ref):
    # x (B, in_f); w1 (in_f, 128); b1 (1, 128); w2 (hidden, 128); b2 (1, 128);
    # o (B, 128). Feature axes are zero-padded to one 128-lane tile so every
    # store is lane-dense; the wrapper slices the padding off.
    x = x_ref[...].astype(jnp.float32)
    w1 = w1_ref[...]
    w2 = w2_ref[...]
    in_features = w1.shape[0]
    hidden = w2.shape[0]
    bsz, lanes = x.shape[0], w1.shape[1]

    # linear1 (fan-in 1) and linear2 (fan-in 10): exact-f32 VPU broadcast FMAs.
    # The MXU would be idle at these sizes and would add bf16 rounding.
    # TODO(synk): if batch size grows beyond toy sizes, switch linear2 to an
    # MXU jnp.dot on a 128x128 zero-padded w2 and add a grid over B with
    # flash-style running max/sum for the dim-0 softmax.
    h = jnp.broadcast_to(b1_ref[...], (bsz, lanes))
    for i in range(in_features):
        h = h + x[:, i:i + 1] * w1[i:i + 1, :]
    y = jnp.broadcast_to(b2_ref[...], (bsz, lanes))
    for k in range(hidden):
        y = y + h[:, k:k + 1] * w2[k:k + 1, :]

    # Discrete: numerically-stable softmax over dim 0 (batch). Padded columns
    # are exactly zero and are sliced off by the wrapper.
    m = jnp.max(y, axis=0, keepdims=True)
    e = jnp.exp(y - m)
    s = jnp.sum(e, axis=0, keepdims=True)
    o_ref[...] = (e * pl.reciprocal(s, approx=False)).astype(o_ref.dtype)


def init_discrete_model_params(key, in_features=1, hidden=10, num_outputs=2):
    """torch.nn.Linear-style init (U(-1/sqrt(fan_in), +1/sqrt(fan_in))).
    Weights are stored pre-padded to one 128-lane tile (padding hoisted out of
    the forward pass, per the perf review)."""
    k1, k2, k3, k4 = jax.random.split(key, 4)
    lim1 = 1.0 / math.sqrt(in_features)
    lim2 = 1.0 / math.sqrt(hidden)
    w1 = jax.random.uniform(k1, (in_features, hidden), jnp.float32, -lim1, lim1)
    b1 = jax.random.uniform(k2, (hidden,), jnp.float32, -lim1, lim1)
    w2 = jax.random.uniform(k3, (hidden, num_outputs), jnp.float32, -lim2, lim2)
    b2 = jax.random.uniform(k4, (num_outputs,), jnp.float32, -lim2, lim2)

    w1p = jnp.zeros((in_features, _LANES), jnp.float32).at[:, :hidden].set(w1)
    b1p = jnp.zeros((1, _LANES), jnp.float32).at[0, :hidden].set(b1)
    w2p = jnp.zeros((hidden, _LANES), jnp.float32).at[:, :num_outputs].set(w2)
    b2p = jnp.zeros((1, _LANES), jnp.float32).at[0, :num_outputs].set(b2)
    return {
        "w1_padded": w1p, "b1_padded": b1p,
        "w2_padded": w2p, "b2_padded": b2p,
        "num_outputs": num_outputs,
        # unpadded copies, kept only for the reference check in __main__
        "w1": w1, "b1": b1, "w2": w2, "b2": b2,
    }


def discrete_model_forward(x, params):
    """DiscreteModel.forward: softmax(linear2(linear1(x)), dim=0)."""
    bsz = x.shape[0]
    num_outputs = params["num_outputs"]
    out = pl.pallas_call(
        _discrete_model_kernel,
        out_shape=jax.ShapeDtypeStruct((bsz, _LANES), jnp.float32),
    )(x.astype(jnp.float32), params["w1_padded"], params["b1_padded"],
      params["w2_padded"], params["b2_padded"])
    return out[:, :num_outputs]


if __name__ == "__main__":
    key = jax.random.PRNGKey(0)
    k_params, k_xm, k_x1, k_x2, k_x3 = jax.random.split(key, 5)

    # --- Full DiscreteModel: Linear(1,10) -> Linear(10,2) -> softmax(dim=0) ---
    params = init_discrete_model_params(k_params)
    x_model = jax.random.normal(k_xm, (8, 1), dtype=jnp.float32)
    out_model = jax.block_until_ready(discrete_model_forward(x_model, params))

    h_ref = jnp.dot(x_model, params["w1"],
                    precision=jax.lax.Precision.HIGHEST) + params["b1"]
    y_ref = jnp.dot(h_ref, params["w2"],
                    precision=jax.lax.Precision.HIGHEST) + params["b2"]
    ref_model = jax.nn.softmax(y_ref, axis=0)
    assert out_model.shape == (8, 2)
    assert jnp.allclose(out_model, ref_model, atol=1e-5, rtol=1e-5)
    assert jnp.allclose(jnp.sum(out_model, axis=0), 1.0, atol=1e-5)

    # --- Standalone `Discrete` (softmax over dim 0), lane-aligned N ---
    x1 = jax.random.normal(k_x1, (2, 4, 16, 16), dtype=jnp.float32)
    out1 = jax.block_until_ready(softmax_dim0(x1))
    assert out1.shape == x1.shape
    assert jnp.allclose(out1, jax.nn.softmax(x1, axis=0), atol=1e-6, rtol=1e-6)
    assert jnp.allclose(jnp.sum(out1, axis=0), 1.0, atol=1e-5)

    # --- Non-multiple-of-128 N: forced multi-block grid (partial edge block) ---
    x2 = jax.random.normal(k_x2, (2, 4, 10, 10), dtype=jnp.float32)
    out2 = jax.block_until_ready(softmax_dim0(x2, tile_n=128))
    assert out2.shape == x2.shape
    assert jnp.allclose(out2, jax.nn.softmax(x2, axis=0), atol=1e-6, rtol=1e-6)
    # default path (single full-width block) on the same data
    out2b = jax.block_until_ready(softmax_dim0(x2))
    assert jnp.allclose(out2b, jax.nn.softmax(x2, axis=0), atol=1e-6, rtol=1e-6)

    # --- Large-B fallback (two-pass online softmax), forced at small shapes ---
    x3 = jax.random.normal(k_x3, (20, 3, 10, 10), dtype=jnp.float32)
    out3 = jax.block_until_ready(
        softmax_dim0(x3, force_two_pass=True,
                     two_pass_tile_b=8, two_pass_tile_n=128))
    assert out3.shape == x3.shape
    assert jnp.allclose(out3, jax.nn.softmax(x3, axis=0), atol=1e-5, rtol=1e-5)
    assert jnp.allclose(jnp.sum(out3, axis=0), 1.0, atol=1e-4)

    print("KERNEL_OK")
</pallas_src>

<mosaic_0001>
module attributes {stable_mosaic.version = 11 : i64} {
  func.func @_discrete_model_kernel(%arg0: memref<8x1xf32, #tpu.memory_space<vmem>>, %arg1: memref<1x128xf32, #tpu.memory_space<vmem>>, %arg2: memref<1x128xf32, #tpu.memory_space<vmem>>, %arg3: memref<10x128xf32, #tpu.memory_space<vmem>>, %arg4: memref<1x128xf32, #tpu.memory_space<vmem>>, %arg5: memref<8x128xf32, #tpu.memory_space<vmem>>) attributes {dimension_semantics = [], scalar_prefetch = 0 : i64, scratch_operands = 0 : i64, tpu.core_type = #tpu.core_type<tc>} {
    %c0 = arith.constant 0 : index
    %c0_0 = arith.constant 0 : index
    %0 = vector.load %arg0[%c0, %c0_0] : memref<8x1xf32, #tpu.memory_space<vmem>>, vector<8x1xf32>
    %c0_1 = arith.constant 0 : index
    %c0_2 = arith.constant 0 : index
    %1 = vector.load %arg1[%c0_1, %c0_2] : memref<1x128xf32, #tpu.memory_space<vmem>>, vector<1x128xf32>
    %c0_3 = arith.constant 0 : index
    %c0_4 = arith.constant 0 : index
    %2 = vector.load %arg3[%c0_3, %c0_4] : memref<10x128xf32, #tpu.memory_space<vmem>>, vector<10x128xf32>
    %c0_5 = arith.constant 0 : index
    %c0_6 = arith.constant 0 : index
    %3 = vector.load %arg2[%c0_5, %c0_6] : memref<1x128xf32, #tpu.memory_space<vmem>>, vector<1x128xf32>
    %4 = vector.shape_cast %3 : vector<1x128xf32> to vector<1x128xf32>
    %5 = vector.broadcast %4 : vector<1x128xf32> to vector<8x128xf32>
    %6 = vector.broadcast %0 : vector<8x1xf32> to vector<8x128xf32>
    %7 = vector.broadcast %1 : vector<1x128xf32> to vector<8x128xf32>
    %8 = arith.mulf %6, %7 : vector<8x128xf32>
    %9 = arith.addf %5, %8 : vector<8x128xf32>
    %c0_7 = arith.constant 0 : index
    %c0_8 = arith.constant 0 : index
    %10 = vector.load %arg4[%c0_7, %c0_8] : memref<1x128xf32, #tpu.memory_space<vmem>>, vector<1x128xf32>
    %11 = vector.shape_cast %10 : vector<1x128xf32> to vector<1x128xf32>
    %12 = vector.broadcast %11 : vector<1x128xf32> to vector<8x128xf32>
    %13 = vector.extract_strided_slice %9 {offsets = [0, 0], sizes = [8, 1], strides = [1, 1]} : vector<8x128xf32> to vector<8x1xf32>
    %14 = vector.extract_strided_slice %2 {offsets = [0, 0], sizes = [1, 128], strides = [1, 1]} : vector<10x128xf32> to vector<1x128xf32>
    %15 = vector.broadcast %13 : vector<8x1xf32> to vector<8x128xf32>
    %16 = vector.broadcast %14 : vector<1x128xf32> to vector<8x128xf32>
    %17 = arith.mulf %15, %16 : vector<8x128xf32>
    %18 = arith.addf %12, %17 : vector<8x128xf32>
    %19 = vector.extract_strided_slice %9 {offsets = [0, 1], sizes = [8, 1], strides = [1, 1]} : vector<8x128xf32> to vector<8x1xf32>
    %20 = vector.extract_strided_slice %2 {offsets = [1, 0], sizes = [1, 128], strides = [1, 1]} : vector<10x128xf32> to vector<1x128xf32>
    %21 = vector.broadcast %19 : vector<8x1xf32> to vector<8x128xf32>
    %22 = vector.broadcast %20 : vector<1x128xf32> to vector<8x128xf32>
    %23 = arith.mulf %21, %22 : vector<8x128xf32>
    %24 = arith.addf %18, %23 : vector<8x128xf32>
    %25 = vector.extract_strided_slice %9 {offsets = [0, 2], sizes = [8, 1], strides = [1, 1]} : vector<8x128xf32> to vector<8x1xf32>
    %26 = vector.extract_strided_slice %2 {offsets = [2, 0], sizes = [1, 128], strides = [1, 1]} : vector<10x128xf32> to vector<1x128xf32>
    %27 = vector.broadcast %25 : vector<8x1xf32> to vector<8x128xf32>
    %28 = vector.broadcast %26 : vector<1x128xf32> to vector<8x128xf32>
    %29 = arith.mulf %27, %28 : vector<8x128xf32>
    %30 = arith.addf %24, %29 : vector<8x128xf32>
    %31 = vector.extract_strided_slice %9 {offsets = [0, 3], sizes = [8, 1], strides = [1, 1]} : vector<8x128xf32> to vector<8x1xf32>
    %32 = vector.extract_strided_slice %2 {offsets = [3, 0], sizes = [1, 128], strides = [1, 1]} : vector<10x128xf32> to vector<1x128xf32>
    %33 = vector.broadcast %31 : vector<8x1xf32> to vector<8x128xf32>
    %34 = vector.broadcast %32 : vector<1x128xf32> to vector<8x128xf32>
    %35 = arith.mulf %33, %34 : vector<8x128xf32>
    %36 = arith.addf %30, %35 : vector<8x128xf32>
    %37 = vector.extract_strided_slice %9 {offsets = [0, 4], sizes = [8, 1], strides = [1, 1]} : vector<8x128xf32> to vector<8x1xf32>
    %38 = vector.extract_strided_slice %2 {offsets = [4, 0], sizes = [1, 128], strides = [1, 1]} : vector<10x128xf32> to vector<1x128xf32>
    %39 = vector.broadcast %37 : vector<8x1xf32> to vector<8x128xf32>
    %40 = vector.broadcast %38 : vector<1x128xf32> to vector<8x128xf32>
    %41 = arith.mulf %39, %40 : vector<8x128xf32>
    %42 = arith.addf %36, %41 : vector<8x128xf32>
    %43 = vector.extract_strided_slice %9 {offsets = [0, 5], sizes = [8, 1], strides = [1, 1]} : vector<8x128xf32> to vector<8x1xf32>
    %44 = vector.extract_strided_slice %2 {offsets = [5, 0], sizes = [1, 128], strides = [1, 1]} : vector<10x128xf32> to vector<1x128xf32>
    %45 = vector.broadcast %43 : vector<8x1xf32> to vector<8x128xf32>
    %46 = vector.broadcast %44 : vector<1x128xf32> to vector<8x128xf32>
    %47 = arith.mulf %45, %46 : vector<8x128xf32>
    %48 = arith.addf %42, %47 : vector<8x128xf32>
    %49 = vector.extract_strided_slice %9 {offsets = [0, 6], sizes = [8, 1], strides = [1, 1]} : vector<8x128xf32> to vector<8x1xf32>
    %50 = vector.extract_strided_slice %2 {offsets = [6, 0], sizes = [1, 128], strides = [1, 1]} : vector<10x128xf32> to vector<1x128xf32>
    %51 = vector.broadcast %49 : vector<8x1xf32> to vector<8x128xf32>
    %52 = vector.broadcast %50 : vector<1x128xf32> to vector<8x128xf32>
    %53 = arith.mulf %51, %52 : vector<8x128xf32>
    %54 = arith.addf %48, %53 : vector<8x128xf32>
    %55 = vector.extract_strided_slice %9 {offsets = [0, 7], sizes = [8, 1], strides = [1, 1]} : vector<8x128xf32> to vector<8x1xf32>
    %56 = vector.extract_strided_slice %2 {offsets = [7, 0], sizes = [1, 128], strides = [1, 1]} : vector<10x128xf32> to vector<1x128xf32>
    %57 = vector.broadcast %55 : vector<8x1xf32> to vector<8x128xf32>
    %58 = vector.broadcast %56 : vector<1x128xf32> to vector<8x128xf32>
    %59 = arith.mulf %57, %58 : vector<8x128xf32>
    %60 = arith.addf %54, %59 : vector<8x128xf32>
    %61 = vector.extract_strided_slice %9 {offsets = [0, 8], sizes = [8, 1], strides = [1, 1]} : vector<8x128xf32> to vector<8x1xf32>
    %62 = vector.extract_strided_slice %2 {offsets = [8, 0], sizes = [1, 128], strides = [1, 1]} : vector<10x128xf32> to vector<1x128xf32>
    %63 = vector.broadcast %61 : vector<8x1xf32> to vector<8x128xf32>
    %64 = vector.broadcast %62 : vector<1x128xf32> to vector<8x128xf32>
    %65 = arith.mulf %63, %64 : vector<8x128xf32>
    %66 = arith.addf %60, %65 : vector<8x128xf32>
    %67 = vector.extract_strided_slice %9 {offsets = [0, 9], sizes = [8, 1], strides = [1, 1]} : vector<8x128xf32> to vector<8x1xf32>
    %68 = vector.extract_strided_slice %2 {offsets = [9, 0], sizes = [1, 128], strides = [1, 1]} : vector<10x128xf32> to vector<1x128xf32>
    %69 = vector.broadcast %67 : vector<8x1xf32> to vector<8x128xf32>
    %70 = vector.broadcast %68 : vector<1x128xf32> to vector<8x128xf32>
    %71 = arith.mulf %69, %70 : vector<8x128xf32>
    %72 = arith.addf %66, %71 : vector<8x128xf32>
    %cst = arith.constant dense<0xFF800000> : vector<128xf32>
    %73 = vector.multi_reduction <maximumf>, %72, %cst [0] : vector<8x128xf32> to vector<128xf32>
    %74 = vector.shape_cast %73 : vector<128xf32> to vector<1x128xf32>
    %75 = vector.broadcast %74 : vector<1x128xf32> to vector<8x128xf32>
    %76 = arith.subf %72, %75 : vector<8x128xf32>
    %77 = math.exp %76 : vector<8x128xf32>
    %cst_9 = arith.constant dense<0.000000e+00> : vector<128xf32>
    %78 = vector.multi_reduction <add>, %77, %cst_9 [0] : vector<8x128xf32> to vector<128xf32>
    %79 = vector.shape_cast %78 : vector<128xf32> to vector<1x128xf32>
    %80 = tpu.reciprocal %79 : vector<1x128xf32> -> vector<1x128xf32>
    %81 = vector.broadcast %80 : vector<1x128xf32> to vector<8x128xf32>
    %82 = arith.mulf %77, %81 : vector<8x128xf32>
    %c0_10 = arith.constant 0 : index
    %c0_11 = arith.constant 0 : index
    %83 = vector.load %arg5[%c0_10, %c0_11] : memref<8x128xf32, #tpu.memory_space<vmem>>, vector<8x128xf32>
    tpu.vector_store %arg5[%c0_10, %c0_11], %82 {strides = array<i32>} : memref<8x128xf32, #tpu.memory_space<vmem>>, vector<8x128xf32>,
    return
  }
}

</mosaic_0001>

<llo_original>
// kernel: tpu_custom_call.1
$region0: #{tpu_custom_call.1}
  #allocation0 [shape = 'u32[]', space=smem, size = 0x4, offset = 0x4, fixed_abs, tag = 'smem constant byte address 0x4 - core index']
  #allocation1 [shape = 'u32[144,128]{1,0:T(1,128)}', space=vmem, size = 0x12000, scoped, tag = 'internal scratch']
  %s0 = inlined_call_operand.vmem [shape: f32[8,1], index: 0, kind: input, shape index: {}]
  %s1 = inlined_call_operand.vmem [shape: f32[1,128], index: 1, kind: input, shape index: {}]
  %s2 = inlined_call_operand.vmem [shape: f32[1,128], index: 2, kind: input, shape index: {}]
  %s3 = inlined_call_operand.vmem [shape: f32[10,128], index: 3, kind: input, shape index: {}]
  %s4 = inlined_call_operand.vmem [shape: f32[1,128], index: 4, kind: input, shape index: {}]
  %s5 = inlined_call_operand.hbm [shape: f32[8,128], index: 5, kind: output, shape index: {}]
  %s6 = sld [smem:[#allocation0]]
  $region30: #{tpu_custom_call.1} parent=0
    _
  %s8 = ssub.s32 1, %s6
  %s9 = scalar_select 0, %s8, %s6
  $region1: #{tpu_custom_call.1} parent=0
    #allocation2 [shape = 'u8[4096]{0}', space=vmem, size = 0x1000, scoped, tag = 'output window, operand 0, single buffered']
    #allocation3 [shape = 's32[1]{0}', space=sflag, size = 0x4, scoped, tag = 'scoped memory for tpu_custom_call.1']
    %10 = vsyncpa [#allocation3], 0
    // Predicated region
    $region2: #{tpu_custom_call.1} parent=1 // pred_check
      _
    $region3: #{tpu_custom_call.1} parent=1 // pred_check_branch
      %12 = sbr.rel (0) target = $region5
    $region4: #{tpu_custom_call.1} parent=1 // pred_region
      _
    $region5: #{tpu_custom_call.1} parent=1 // pred_fallthru
      _
    // Predicated region
    $region6: #{tpu_custom_call.1} parent=1 // pred_check
      _
    $region7: #{tpu_custom_call.1} parent=1 // pred_check_branch
      %14 = sbr.rel (0) target = $region9
    $region8: #{tpu_custom_call.1} parent=1 // pred_region
      _
    $region9: #{tpu_custom_call.1} parent=1 // pred_fallthru
      _
    // Predicated region
    $region10: #{tpu_custom_call.1} parent=1 // pred_check
      _
    $region11: #{tpu_custom_call.1} parent=1 // pred_check_branch
      %16 = sbr.rel (0) target = $region13
    $region12: #{tpu_custom_call.1} parent=1 // pred_region
      _
    $region13: #{tpu_custom_call.1} parent=1 // pred_fallthru
      _
    // Predicated region
    $region14: #{tpu_custom_call.1} parent=1 // pred_check
      _
    $region15: #{tpu_custom_call.1} parent=1 // pred_check_branch
      %18 = sbr.rel (0) target = $region17
    $region16: #{tpu_custom_call.1} parent=1 // pred_region
      _
    $region17: #{tpu_custom_call.1} parent=1 // pred_fallthru
      _
    // Predicated region
    $region18: #{tpu_custom_call.1} parent=1 // pred_check
      _
    $region19: #{tpu_custom_call.1} parent=1 // pred_check_branch
      %20 = sbr.rel (0) target = $region21
    $region20: #{tpu_custom_call.1} parent=1 // pred_region
      _
    $region21: #{tpu_custom_call.1} parent=1 // pred_fallthru
      _
    %v21 = vld [vmem:[%s0] sm:$0xff]
    %v22 = vld [vmem:[%s1] sm:$0x1]
    %v23 = vld [vmem:[%s3] sm:$0xff]
    %v24 = vld [vmem:[%s3 + $0x8] sm:$0x3]
    %v25 = vld [vmem:[%s2] sm:$0x1]
    %v27 = vlaneseq
    %v28 = vshrl.u32 %v27, 7
    %v29 = vsub.s32 0, %v28
    %v30 = vrot.slane %v25, %v29
    %33 = vset.pattern.permute.xlu0 0
    %34 = vperm.xlu0 %33, %v21
    %v35 = vpop.permute.xlu0 %34
    %v38 = vlaneseq
    %v39 = vshrl.u32 %v38, 7
    %v40 = vsub.s32 0, %v39
    %v41 = vrot.slane %v22, %v40
    %v43 = vmul.f32 %v35, %v41
    %v44 = vadd.f32 %v30, %v43
    %v45 = vld [vmem:[%s4] sm:$0x1]
    %v47 = vlaneseq
    %v48 = vshrl.u32 %v47, 7
    %v49 = vsub.s32 0, %v48
    %v50 = vrot.slane %v45, %v49
    %53 = vset.pattern.permute.xlu0 0
    %54 = vperm.xlu0 %53, %v44
    %v55 = vpop.permute.xlu0 %54
    %v57 = vlaneseq
    %v58 = vshrl.u32 %v57, 7
    %v59 = vsub.s32 0, %v58
    %v60 = vrot.slane %v23, %v59
    %v61 = vmul.f32 %v55, %v60
    %v62 = vadd.f32 %v50, %v61
    %63 = vset.pattern.permute.xlu0 1
    %64 = vperm.xlu0 %63, %v44
    %v65 = vpop.permute.xlu0 %64
    %v67 = vlaneseq
    %v68 = vshrl.u32 %v67, 7
    %v69 = vsub.s32 1, %v68
    %v70 = vrot.slane %v23, %v69
    %v71 = vmul.f32 %v65, %v70
    %v72 = vadd.f32 %v62, %v71
    %73 = vset.pattern.permute.xlu0 2
    %74 = vperm.xlu0 %73, %v44
    %v75 = vpop.permute.xlu0 %74
    %v77 = vlaneseq
    %v78 = vshrl.u32 %v77, 7
    %v79 = vsub.s32 2, %v78
    %v80 = vrot.slane %v23, %v79
    %v81 = vmul.f32 %v75, %v80
    %v82 = vadd.f32 %v72, %v81
    %83 = vset.pattern.permute.xlu0 3
    %84 = vperm.xlu0 %83, %v44
    %v85 = vpop.permute.xlu0 %84
    %v87 = vlaneseq
    %v88 = vshrl.u32 %v87, 7
    %v89 = vsub.s32 3, %v88
    %v90 = vrot.slane %v23, %v89
    %v91 = vmul.f32 %v85, %v90
    %v92 = vadd.f32 %v82, %v91
    %93 = vset.pattern.permute.xlu0 4
    %94 = vperm.xlu0 %93, %v44
    %v95 = vpop.permute.xlu0 %94
    %v97 = vlaneseq
    %v98 = vshrl.u32 %v97, 7
    %v99 = vsub.s32 4, %v98
    %v100 = vrot.slane %v23, %v99
    %v101 = vmul.f32 %v95, %v100
    %v102 = vadd.f32 %v92, %v101
    %103 = vset.pattern.permute.xlu0 5
    %104 = vperm.xlu0 %103, %v44
    %v105 = vpop.permute.xlu0 %104
    %v107 = vlaneseq
    %v108 = vshrl.u32 %v107, 7
    %v109 = vsub.s32 5, %v108
    %v110 = vrot.slane %v23, %v109
    %v111 = vmul.f32 %v105, %v110
    %v112 = vadd.f32 %v102, %v111
    %113 = vset.pattern.permute.xlu0 6
    %114 = vperm.xlu0 %113, %v44
    %v115 = vpop.permute.xlu0 %114
    %v117 = vlaneseq
    %v118 = vshrl.u32 %v117, 7
    %v119 = vsub.s32 6, %v118
    %v120 = vrot.slane %v23, %v119
    %v121 = vmul.f32 %v115, %v120
    %v122 = vadd.f32 %v112, %v121
    %123 = vset.pattern.permute.xlu0 7
    %124 = vperm.xlu0 %123, %v44
    %v125 = vpop.permute.xlu0 %124
    %v127 = vlaneseq
    %v128 = vshrl.u32 %v127, 7
    %v129 = vsub.s32 7, %v128
    %v130 = vrot.slane %v23, %v129
    %v131 = vmul.f32 %v125, %v130
    %v132 = vadd.f32 %v122, %v131
    %133 = vset.pattern.permute.xlu0 8
    %134 = vperm.xlu0 %133, %v44
    %v135 = vpop.permute.xlu0 %134
    %v137 = vlaneseq
    %v138 = vshrl.u32 %v137, 7
    %v139 = vsub.s32 0, %v138
    %v140 = vrot.slane %v24, %v139
    %v141 = vmul.f32 %v135, %v140
    %v142 = vadd.f32 %v132, %v141
    %143 = vset.pattern.permute.xlu0 9
    %144 = vperm.xlu0 %143, %v44
    %v145 = vpop.permute.xlu0 %144
    %v147 = vlaneseq
    %v148 = vshrl.u32 %v147, 7
    %v149 = vsub.s32 1, %v148
    %v150 = vrot.slane %v24, %v149
    %v151 = vmul.f32 %v145, %v150
    %v152 = vadd.f32 %v142, %v151
    %v153 = vrot.slane %v152, 4
    %v154 = vmax.f32 %v152, %v153
    %v155 = vrot.slane %v154, 2
    %v156 = vmax.f32 %v154, %v155
    %v157 = vrot.slane %v156, 1
    %v158 = vmax.f32 %v156, %v157
    %v159 = vsub.f32 %v152, %v158
    %v160 = vmul.f32 %v159, 1.442695
    %v161 = vpow.pop %v160
    %v162 = vrot.slane %v161, 4
    %v163 = vadd.f32 %v161, %v162
    %v164 = vrot.slane %v163, 2
    %v165 = vadd.f32 %v163, %v164
    %v166 = vrot.slane %v165, 1
    %v167 = vadd.f32 %v165, %v166
    %v168 = vrcp.pop %v167
    %v169 = vmul.f32 %v161, %v168
    %170 = vst [vmem:[#allocation2] sm:$0xff] %v169
    // Predicated region
    $region22: #{tpu_custom_call.1} parent=1 // pred_check
      _
    $region23: #{tpu_custom_call.1} parent=1 // pred_check_branch
      %172 = sbr.rel (0) target = $region25
    $region24: #{tpu_custom_call.1} parent=1 // pred_region
      %s174 = ssub.s32 128, 128
      %175 = vsyncadd [#allocation3], %s174
      %s177 = sshll.u32 [#allocation2], 4
      %s178 = int_to_ptr.vmem [resolvable:$true] %s177
      %180 = dma.vmem_to_hbm [thread:$0]  %s178, 128, %s5, [#allocation3]
    $region25: #{tpu_custom_call.1} parent=1 // pred_fallthru
      _
    // Predicated region
    $region26: #{tpu_custom_call.1} parent=1 // pred_check
      _
    $region27: #{tpu_custom_call.1} parent=1 // pred_check_branch
      %182 = sbr.rel (0) target = $region29
    $region28: #{tpu_custom_call.1} parent=1 // pred_region
      %183 = dma.done [#allocation3], 128
    $region29: #{tpu_custom_call.1} parent=1 // pred_fallthru
      _
    %184 = vsyncpa [#allocation3], 1

</llo_original>
